<compile_context>
chip_gen: v7x
topology: tpu7x:2x2x1
jax: 0.10.0
libtpu: 0.0.40
codegen_flags: <defaults>
</compile_context>

<pallas_src>
import jax
import jax.numpy as jnp
from jax.experimental import pallas as pl
from jax.experimental.pallas import tpu as pltpu


def mlp_kernel(x_ref, wft_ref, bft_ref, o_ref):
    # x_ref  : (TB, 16) natural-layout batch tile (float32 or bfloat16)
    # wft_ref: (10, 16) fused weight (W1 @ W2)^T
    # bft_ref: (10, 1)  fused bias   (b1 @ W2 + b2)^T
    # o_ref  : (10, TB) lane-dense output tile
    x = x_ref[...].astype(jnp.float32)   # no-op for f32 inputs; upcast for bf16 I/O
    xt = jnp.transpose(x)                # (16, TB) -- XLU, hidden under the x DMA
    acc = jnp.dot(wft_ref[...], xt, preferred_element_type=jnp.float32)  # (10, TB)
    o_ref[...] = jnp.maximum(acc + bft_ref[...], 0.0).astype(o_ref.dtype)


def mlp_forward(x, w1, b1, w2, b2, *, tb=None, target_tiles=8, tb_max=32768,
                lane_dense_out=False):
    """Forward pass of the MLP.

    x : (B, 16) float32 or bfloat16
    w1: (16, 32), b1: (1, 32), w2: (32, 10), b2: (1, 10)  (float32)
    Returns (B, 10) float32, or the lane-dense (10, B) form if lane_dense_out.
    """
    B, in_f = x.shape
    out_f = w2.shape[1]

    # --- algebraic fusion of the two bias-linears (exact; tiny, done once) ---
    wf = w1 @ w2              # (16, 10)
    bf = b1 @ w2 + b2         # (1, 10)
    wft = wf.T                # (10, 16)
    bft = bf.T                # (10, 1)

    # --- batch-tile selection (no padding of x; ragged tail handled by Pallas) ---
    if tb is None:
        if B <= 1024:
            tb_sel = B                                   # single full block
        else:
            tb_sel = pl.cdiv(B, target_tiles)
            tb_sel = min(tb_max, max(128, ((tb_sel + 127) // 128) * 128))
    else:
        tb_sel = min(tb, B)
    if tb_sel < B:                                       # tiled path: lane-align
        tb_sel = ((tb_sel + 127) // 128) * 128
    n_tiles = pl.cdiv(B, tb_sel)

    out_t = pl.pallas_call(
        mlp_kernel,
        out_shape=jax.ShapeDtypeStruct((out_f, B), jnp.float32),
        grid=(n_tiles,),
        in_specs=[
            pl.BlockSpec((tb_sel, in_f), lambda i: (i, 0)),   # x tile, natural layout
            pl.BlockSpec((out_f, in_f), lambda i: (0, 0)),    # fused weight, VMEM-resident
            pl.BlockSpec((out_f, 1), lambda i: (0, 0)),       # fused bias,  VMEM-resident
        ],
        out_specs=pl.BlockSpec((out_f, tb_sel), lambda i: (0, i)),
        compiler_params=pltpu.CompilerParams(
            dimension_semantics=("parallel",),        # batch tiles across TCs on v7x
            vmem_limit_bytes=48 * 1024 * 1024,        # headroom for 32K-row tiles
        ),
    )(x, wft, bft)

    if lane_dense_out:
        return out_t            # (10, B): consumer fuses any needed transpose
    # NOTE: kept only to honour the nn.Module's (B, 10) contract; per the perf
    # review this relayout should be fused into the consumer when possible.
    return out_t.T


def init_params(key):
    # Deterministic init mimicking PyTorch Linear default:
    # U(-1/sqrt(fan_in), 1/sqrt(fan_in)) for both weights and biases.
    k1, k2, k3, k4 = jax.random.split(key, 4)
    in1, out1 = 16, 32
    in2, out2 = 32, 10
    bound1 = 1.0 / jnp.sqrt(in1)
    bound2 = 1.0 / jnp.sqrt(in2)
    w1 = jax.random.uniform(k1, (in1, out1), jnp.float32, -bound1, bound1)
    b1 = jax.random.uniform(k2, (1, out1), jnp.float32, -bound1, bound1)
    w2 = jax.random.uniform(k3, (in2, out2), jnp.float32, -bound2, bound2)
    b2 = jax.random.uniform(k4, (1, out2), jnp.float32, -bound2, bound2)
    return w1, b1, w2, b2


if __name__ == "__main__":
    key = jax.random.PRNGKey(0)
    kx, kp, kx2 = jax.random.split(key, 3)

    w1, b1, w2, b2 = init_params(kp)

    def ref_mlp(xx):
        return jnp.maximum((xx @ w1 + b1) @ w2 + b2, 0.0)

    # 1) Small batch, single full block (matches the PyTorch module shapes).
    x = jax.random.normal(kx, (8, 16), jnp.float32)
    out = jax.block_until_ready(mlp_forward(x, w1, b1, w2, b2))
    assert out.shape == (8, 10)
    assert jnp.allclose(out, ref_mlp(x), atol=1e-4, rtol=1e-4)

    # 2) Multi-tile path (4 batch tiles of 128) + lane-dense output variant.
    x2 = jax.random.normal(kx2, (512, 16), jnp.float32)
    out2 = jax.block_until_ready(mlp_forward(x2, w1, b1, w2, b2, tb=128))
    assert out2.shape == (512, 10)
    assert jnp.allclose(out2, ref_mlp(x2), atol=1e-4, rtol=1e-4)

    out2_ld = jax.block_until_ready(
        mlp_forward(x2, w1, b1, w2, b2, tb=128, lane_dense_out=True))
    assert out2_ld.shape == (10, 512)
    assert jnp.allclose(out2_ld, ref_mlp(x2).T, atol=1e-4, rtol=1e-4)

    # 3) bfloat16 activations (halves the dominant HBM read; math stays f32).
    out_bf = jax.block_until_ready(
        mlp_forward(x2.astype(jnp.bfloat16), w1, b1, w2, b2, tb=128))
    assert out_bf.dtype == jnp.float32
    assert jnp.allclose(out_bf, ref_mlp(x2), atol=5e-2, rtol=5e-2)

    print("KERNEL_OK")
</pallas_src>

<mosaic_0001>
module attributes {stable_mosaic.version = 11 : i64} {
  func.func @mlp_kernel(%arg0: i32, %arg1: memref<8x16xf32, #tpu.memory_space<vmem>>, %arg2: memref<10x16xf32, #tpu.memory_space<vmem>>, %arg3: memref<10x1xf32, #tpu.memory_space<vmem>>, %arg4: memref<10x8xf32, #tpu.memory_space<vmem>>) attributes {dimension_semantics = [#tpu.dimension_semantics<parallel>], iteration_bounds = array<i64: 1>, scalar_prefetch = 0 : i64, scratch_operands = 0 : i64, tpu.core_type = #tpu.core_type<tc>, window_params = [{transform_indices = @transform_0, window_bounds = array<i64: 8, 16>}, {pipeline_mode = #tpu.pipeline_mode<synchronous>, transform_indices = @transform_1, window_bounds = array<i64: 10, 16>}, {pipeline_mode = #tpu.pipeline_mode<synchronous>, transform_indices = @transform_2, window_bounds = array<i64: 10, 1>}, {transform_indices = @transform_3, window_bounds = array<i64: 10, 8>}]} {
    %c0 = arith.constant 0 : index
    %c0_0 = arith.constant 0 : index
    %0 = vector.load %arg1[%c0, %c0_0] : memref<8x16xf32, #tpu.memory_space<vmem>>, vector<8x16xf32>
    %1 = tpu.transpose %0, [1, 0] : vector<8x16xf32> -> vector<16x8xf32>
    %c0_1 = arith.constant 0 : index
    %c0_2 = arith.constant 0 : index
    %2 = vector.load %arg2[%c0_1, %c0_2] : memref<10x16xf32, #tpu.memory_space<vmem>>, vector<10x16xf32>
    %cst = arith.constant dense<0.000000e+00> : vector<10x8xf32>
    %3 = tpu.matmul %2, %1, %cst {dimension_numbers = #tpu.dot_dimension_numbers<[1], [0], [0], [1], [0, 0, 1, 1], [], []>} : vector<10x16xf32>, vector<16x8xf32>, vector<10x8xf32> -> vector<10x8xf32>
    %c0_3 = arith.constant 0 : index
    %c0_4 = arith.constant 0 : index
    %4 = vector.load %arg3[%c0_3, %c0_4] : memref<10x1xf32, #tpu.memory_space<vmem>>, vector<10x1xf32>
    %5 = vector.broadcast %4 : vector<10x1xf32> to vector<10x8xf32>
    %6 = arith.addf %3, %5 : vector<10x8xf32>
    %cst_5 = arith.constant 0.000000e+00 : f32
    %7 = vector.broadcast %cst_5 : f32 to vector<10x8xf32>
    %8 = arith.maximumf %6, %7 : vector<10x8xf32>
    %c0_6 = arith.constant 0 : index
    %c0_7 = arith.constant 0 : index
    %9 = vector.load %arg4[%c0_6, %c0_7] : memref<10x8xf32, #tpu.memory_space<vmem>>, vector<10x8xf32>
    tpu.vector_store %arg4[%c0_6, %c0_7], %8 {strides = array<i32>} : memref<10x8xf32, #tpu.memory_space<vmem>>, vector<10x8xf32>,
    return
  }
  func.func @transform_0(%arg0: i32) -> (i32, i32) {
    %c0_i32 = arith.constant 0 : i32
    %c0_i32_0 = arith.constant 0 : i32
    return %arg0, %c0_i32 : i32, i32
  }
  func.func @transform_1(%arg0: i32) -> (i32, i32) {
    %c0_i32 = arith.constant 0 : i32
    %c0_i32_0 = arith.constant 0 : i32
    %c0_i32_1 = arith.constant 0 : i32
    return %c0_i32, %c0_i32_0 : i32, i32
  }
  func.func @transform_2(%arg0: i32) -> (i32, i32) {
    %c0_i32 = arith.constant 0 : i32
    %c0_i32_0 = arith.constant 0 : i32
    %c0_i32_1 = arith.constant 0 : i32
    return %c0_i32, %c0_i32_0 : i32, i32
  }
  func.func @transform_3(%arg0: i32) -> (i32, i32) {
    %c0_i32 = arith.constant 0 : i32
    %c0_i32_0 = arith.constant 0 : i32
    return %c0_i32, %arg0 : i32, i32
  }
}

</mosaic_0001>

<llo_original>
// kernel: tpu_custom_call.1
$region0: #{tpu_custom_call.1}
  #allocation0 [shape = 'u32[]', space=smem, size = 0x4, offset = 0x4, fixed_abs, tag = 'smem constant byte address 0x4 - core index']
  #allocation1 [shape = 'u32[144,128]{1,0:T(1,128)}', space=vmem, size = 0x12000, scoped, tag = 'internal scratch']
  %s0 = inlined_call_operand.hbm [shape: f32[8,16], index: 0, kind: input, shape index: {}]
  %s1 = inlined_call_operand.vmem [shape: f32[10,16], index: 1, kind: input, shape index: {}]
  %s2 = inlined_call_operand.vmem [shape: f32[10,1], index: 2, kind: input, shape index: {}]
  %s3 = inlined_call_operand.vmem [shape: f32[10,8], index: 3, kind: output, shape index: {}]
  %s4 = sld [smem:[#allocation0]]
  $region26: #{tpu_custom_call.1} parent=0
    _
  %s6 = ssub.s32 1, %s4
  %s7 = scalar_select 0, %s6, %s4
  $region1: #{tpu_custom_call.1} parent=0
    #allocation2 [shape = 'u8[4096]{0}', space=vmem, size = 0x1000, scoped, tag = 'input window, operand 0, single buffered']
    #allocation3 [shape = 's32[1]{0}', space=sflag, size = 0x4, scoped, tag = 'scoped memory for tpu_custom_call.1']
    %8 = vsyncpa [#allocation3], 0
    // Predicated region
    $region2: #{tpu_custom_call.1} parent=1 // pred_check
      _
    $region3: #{tpu_custom_call.1} parent=1 // pred_check_branch
      %10 = sbr.rel (0) target = $region5
    $region4: #{tpu_custom_call.1} parent=1 // pred_region
      %s12 = ssub.s32 128, 128
      %13 = vsyncadd [#allocation3], %s12
      %s15 = sshll.u32 [#allocation2], 4
      %s16 = int_to_ptr.vmem [resolvable:$true] %s15
      %18 = dma.hbm_to_vmem [thread:$0]  %s0, 128, %s16, [#allocation3]
    $region5: #{tpu_custom_call.1} parent=1 // pred_fallthru
      _
    // Predicated region
    $region6: #{tpu_custom_call.1} parent=1 // pred_check
      _
    $region7: #{tpu_custom_call.1} parent=1 // pred_check_branch
      %20 = sbr.rel (0) target = $region9
    $region8: #{tpu_custom_call.1} parent=1 // pred_region
      _
    $region9: #{tpu_custom_call.1} parent=1 // pred_fallthru
      _
    // Predicated region
    $region10: #{tpu_custom_call.1} parent=1 // pred_check
      _
    $region11: #{tpu_custom_call.1} parent=1 // pred_check_branch
      %22 = sbr.rel (0) target = $region13
    $region12: #{tpu_custom_call.1} parent=1 // pred_region
      _
    $region13: #{tpu_custom_call.1} parent=1 // pred_fallthru
      _
    // Predicated region
    $region14: #{tpu_custom_call.1} parent=1 // pred_check
      _
    $region15: #{tpu_custom_call.1} parent=1 // pred_check_branch
      %24 = sbr.rel (0) target = $region17
    $region16: #{tpu_custom_call.1} parent=1 // pred_region
      %25 = dma.done [#allocation3], 128
    $region17: #{tpu_custom_call.1} parent=1 // pred_fallthru
      _
    %v26 = vld [vmem:[#allocation2] sm:$0xff]
    %v27 = vld [vmem:[%s1] sm:$0xff]
    %v28 = vld [vmem:[%s1 + $0x8] sm:$0x3]
    %v29 = vld [vmem:[%s2] sm:$0xff]
    %v30 = vld [vmem:[%s2 + $0x8] sm:$0x3]
    %32 = vset.pattern.permute.xlu0 0
    %33 = vperm.xlu0 %32, %v29
    %v34 = vpop.permute.xlu0 %33
    %37 = vset.pattern.permute.xlu0 0
    %38 = vperm.xlu0 %37, %v30
    %v39 = vpop.permute.xlu0 %38
    %vm41 = vcmask 130048
    %v43 = vsel %vm41, %v27, 0
    %v46 = vsel %vm41, %v28, 0
    %v49 = vsel %vm41, %v26, 0
    %51 = vmatprep.subr.mxu0 0.0
    %52 = vmatpush1.xpose.msra.mxu0 %v49
    %53 = vmatprep.subr.mxu0 0.0
    %54 = vmatpush1.xpose.msra.mxu0 0.0
    %55 = vmatprep.subr.mxu0 0.0
    %56 = vmatpush1.xpose.msra.mxu0 0.0
    %57 = vmatprep.subr.mxu0 0.0
    %58 = vmatpush1.xpose.msra.mxu0 0.0
    %59 = vmatprep.subr.mxu0 0.0
    %60 = vmatpush1.xpose.msra.mxu0 0.0
    %61 = vmatprep.subr.mxu0 0.0
    %62 = vmatpush1.xpose.msra.mxu0 0.0
    %63 = vmatprep.subr.mxu0 0.0
    %64 = vmatpush1.xpose.msra.mxu0 0.0
    %65 = vmatprep.subr.mxu0 0.0
    %66 = vmatpush1.xpose.msra.mxu0 0.0
    %67 = vmatprep.subr.mxu0 0.0
    %68 = vmatpush1.xpose.msra.mxu0 0.0
    %69 = vmatprep.subr.mxu0 0.0
    %70 = vmatpush1.xpose.msra.mxu0 0.0
    %71 = vmatprep.subr.mxu0 0.0
    %72 = vmatpush1.xpose.msra.mxu0 0.0
    %73 = vmatprep.subr.mxu0 0.0
    %74 = vmatpush1.xpose.msra.mxu0 0.0
    %75 = vmatprep.subr.mxu0 0.0
    %76 = vmatpush1.xpose.msra.mxu0 0.0
    %77 = vmatprep.subr.mxu0 0.0
    %78 = vmatpush1.xpose.msra.mxu0 0.0
    %79 = vmatprep.subr.mxu0 0.0
    %80 = vmatpush1.xpose.msra.mxu0 0.0
    %81 = vmatprep.subr.mxu0 0.0
    %82 = vmatpush1.xpose.msra.mxu0 0.0
    %83 = vmatprep.subr.mxu0 0.0
    %84 = vmatpush1.xpose.msra.mxu0 0.0
    %85 = vmatprep.subr.mxu0 0.0
    %86 = vmatpush1.xpose.msra.mxu0 0.0
    %87 = vmatprep.subr.mxu0 0.0
    %88 = vmatpush1.xpose.msra.mxu0 0.0
    %89 = vmatprep.subr.mxu0 0.0
    %90 = vmatpush1.xpose.msra.mxu0 0.0
    %91 = vmatprep.subr.mxu0 0.0
    %92 = vmatpush1.xpose.msra.mxu0 0.0
    %93 = vmatprep.subr.mxu0 0.0
    %94 = vmatpush1.xpose.msra.mxu0 0.0
    %95 = vmatprep.subr.mxu0 0.0
    %96 = vmatpush1.xpose.msra.mxu0 0.0
    %97 = vmatprep.subr.mxu0 0.0
    %98 = vmatpush1.xpose.msra.mxu0 0.0
    %99 = vmatprep.subr.mxu0 0.0
    %100 = vmatpush1.xpose.msra.mxu0 0.0
    %101 = vmatprep.subr.mxu0 0.0
    %102 = vmatpush1.xpose.msra.mxu0 0.0
    %103 = vmatprep.subr.mxu0 0.0
    %104 = vmatpush1.xpose.msra.mxu0 0.0
    %105 = vmatprep.subr.mxu0 0.0
    %106 = vmatpush1.xpose.msra.mxu0 0.0
    %107 = vmatprep.subr.mxu0 0.0
    %108 = vmatpush1.xpose.msra.mxu0 0.0
    %109 = vmatprep.subr.mxu0 0.0
    %110 = vmatpush1.xpose.msra.mxu0 0.0
    %111 = vmatprep.subr.mxu0 0.0
    %112 = vmatpush1.xpose.msra.mxu0 0.0
    %113 = vmatprep.subr.mxu0 0.0
    %114 = vmatpush1.xpose.msra.mxu0 0.0
    %115 = vmatprep.mubr.f32.mxu0 0.0
    %116 = vmatmul.mubr.f32.gmra.mrb[0].mxu0 %v43
    %v117 = vpop.f32.mrb[0].mxu0
    %v118 = vadd.f32 %v34, %v117
    %v119 = vpop.f32.mrb[0].mxu0
    %120 = vmatprep.mubr.f32.mxu0 0.0
    %121 = vmatmul.mubr.f32.gmra.mrb[0].mxu0 %v46
    %v122 = vpop.f32.mrb[0].mxu0
    %v123 = vadd.f32 %v39, %v122
    %v124 = vpop.f32.mrb[0].mxu0
    %125 = vdwg.mxu0
    %v126 = vmax.f32 %v118, 0.0
    %v127 = vmax.f32 %v123, 0.0
    %vm128 = vcmask 64512
    %129 = vst.msk [vmem:[%s3] sm:$0xff] %vm128, %v126
    %vm130 = vcmask 58368
    %131 = vst.msk [vmem:[%s3 + $0x8] sm:$0x3] %vm130, %v127
    // Predicated region
    $region18: #{tpu_custom_call.1} parent=1 // pred_check
      _
    $region19: #{tpu_custom_call.1} parent=1 // pred_check_branch
      %133 = sbr.rel (0) target = $region21
    $region20: #{tpu_custom_call.1} parent=1 // pred_region
      _
    $region21: #{tpu_custom_call.1} parent=1 // pred_fallthru
      _
    // Predicated region
    $region22: #{tpu_custom_call.1} parent=1 // pred_check
      _
    $region23: #{tpu_custom_call.1} parent=1 // pred_check_branch
      %135 = sbr.rel (0) target = $region25
    $region24: #{tpu_custom_call.1} parent=1 // pred_region
      _
    $region25: #{tpu_custom_call.1} parent=1 // pred_fallthru
      _
    %136 = vsyncpa [#allocation3], 1

</llo_original>
